<compile_context>
chip_gen: v7x
topology: tpu7x:2x2x1
jax: 0.10.0
libtpu: 0.0.40
codegen_flags: <defaults>
</compile_context>

<pallas_src>
import math

import jax
import jax.numpy as jnp
from jax.experimental import pallas as pl
from jax.experimental.pallas import tpu as pltpu

EPS = 1e-5
MOMENTUM = 0.9
_MAX_BLOCK_BYTES = 4 * 1024 * 1024      # per x tile (Pallas double-buffers it)


# --------------------------------------------------------------------------
# Kernels
# --------------------------------------------------------------------------
def _stats_kernel(x_ref, sum_ref, sq_ref):
    """4-D path pass 1: per-N-block partial per-channel sum / sum-of-squares.

    Output blocks are indexed by the (parallel) N-block axis and stay resident
    across the (arbitrary, innermost) HW-block axis, acting as accumulators.
    """
    @pl.when(pl.program_id(1) == 0)
    def _init():
        sum_ref[...] = jnp.zeros_like(sum_ref)
        sq_ref[...] = jnp.zeros_like(sq_ref)

    x = x_ref[...].astype(jnp.float32)                      # (n_t, C', hw_t)
    sum_ref[...] += jnp.sum(x, axis=(0, 2)).reshape(sum_ref.shape)
    sq_ref[...] += jnp.sum(x * x, axis=(0, 2)).reshape(sq_ref.shape)


def _normalize_kernel(x_ref, scale_ref, shift_ref, y_ref):
    """4-D path pass 2: y = x * scale + shift (per-channel broadcast)."""
    scale = scale_ref[...][None, :, :]                      # (1, C', 1)
    shift = shift_ref[...][None, :, :]
    x = x_ref[...].astype(jnp.float32)
    y_ref[...] = (x * scale + shift).astype(y_ref.dtype)


def _stats2d_kernel(x_ref, sum_ref, sq_ref):
    """2-D (dense) path pass 1: per-row-block partial sums, C on lanes."""
    x = x_ref[...].astype(jnp.float32)                      # (n_t, C)
    sum_ref[...] = jnp.sum(x, axis=0).reshape(sum_ref.shape)
    sq_ref[...] = jnp.sum(x * x, axis=0).reshape(sq_ref.shape)


def _normalize2d_kernel(x_ref, scale_ref, shift_ref, y_ref):
    """2-D (dense) path pass 2: lane-dense y = x * scale + shift."""
    x = x_ref[...].astype(jnp.float32)                      # (n_t, C)
    y_ref[...] = (x * scale_ref[...] + shift_ref[...]).astype(y_ref.dtype)


# --------------------------------------------------------------------------
# Tiling helpers
# --------------------------------------------------------------------------
def _largest_divisor(n, cap, multiple=1):
    """Largest d with d | n, d <= cap, d % multiple == 0 (or None)."""
    best = None
    d = multiple
    limit = min(n, cap)
    while d <= limit:
        if n % d == 0:
            best = d
        d += multiple
    return best


def _choose_fold(N, C, itemsize):
    """Fold factor f (a divisor of N) merged into the channel/sublane axis."""
    sub = 8 if itemsize >= 4 else 32 // itemsize            # 8 f32, 16 bf16
    if C % sub == 0:
        return 1
    need = sub // math.gcd(C, sub)        # smallest f with (f*C) % sub == 0
    return max(math.gcd(N, need), 1)      # best achievable free-reshape fold


def _auto_tiles(Np, Cp, HW, itemsize):
    """Prefer contiguous slabs: keep hw_tile == HW and block over N; only
    split HW (in 128-lane multiples) when one (1, Cp, HW) slab overflows."""
    slab_bytes = Cp * HW * itemsize
    if slab_bytes <= _MAX_BLOCK_BYTES:
        hw_tile = HW
        n_tile = _largest_divisor(Np, _MAX_BLOCK_BYTES // slab_bytes) or 1
    else:
        n_tile = 1
        if HW % 128 == 0:
            cap = max(128, (_MAX_BLOCK_BYTES // max(1, Cp * itemsize))
                      // 128 * 128)
            hw_tile = _largest_divisor(HW, cap, 128) or HW
        else:
            hw_tile = HW                   # ragged HW: accept one big slab
    return n_tile, hw_tile


def _vmem_limit(block_bytes):
    """Derived VMEM budget: tiles + double-buffering + fp32 temps + headroom,
    kept well under 64 MiB physical on v7x."""
    return int(min(40 * 1024 * 1024,
                   max(16 * 1024 * 1024, 6 * block_bytes + 8 * 1024 * 1024)))


# --------------------------------------------------------------------------
# Forward
# --------------------------------------------------------------------------
def batch_norm_forward(x, gamma, beta, moving_mean, moving_var,
                       *, n_tile=None, hw_tile=None):
    """Training-mode BatchNorm forward (Day-33 `batch_norm` with grad enabled).

    x: (N, C) or (N, C, H, W) [NCHW]; gamma/beta/moving_*: (1, C) or
    (1, C, 1, 1). Returns (Y, new_moving_mean, new_moving_var). Y keeps x's
    dtype (fp32 or bf16); statistics accumulate in fp32.
    (n_tile/hw_tile apply to the internally folded (N/f, f*C, HW) view.)
    """
    assert x.ndim in (2, 4)
    if x.dtype not in (jnp.float32, jnp.bfloat16):
        x = x.astype(jnp.float32)
    itemsize = x.dtype.itemsize

    if x.ndim == 2:
        # ---- Lane-dense 2-D (dense-layer) path: channels on the lane axis.
        N, C = x.shape
        count = float(N)
        if n_tile is None:
            if N % 8 == 0:
                cap = max(8, _MAX_BLOCK_BYTES // max(1, C * itemsize))
                n_tile = _largest_divisor(N, cap, 8) or N
            else:
                n_tile = N
        assert N % n_tile == 0
        grid0 = N // n_tile
        blk_bytes = n_tile * C * itemsize
        x_spec = pl.BlockSpec((n_tile, C), lambda i: (i, 0))
        part_spec = pl.BlockSpec((1, 1, C), lambda i: (i, 0, 0))
        vec_spec = pl.BlockSpec((1, C), lambda i: (0, 0))

        psum, psq = pl.pallas_call(
            _stats2d_kernel,
            out_shape=(jax.ShapeDtypeStruct((grid0, 1, C), jnp.float32),) * 2,
            grid_spec=pltpu.PrefetchScalarGridSpec(
                num_scalar_prefetch=0, grid=(grid0,),
                in_specs=[x_spec], out_specs=(part_spec, part_spec)),
            compiler_params=pltpu.CompilerParams(
                dimension_semantics=("parallel",),
                vmem_limit_bytes=_vmem_limit(blk_bytes)),
            cost_estimate=pl.CostEstimate(
                flops=int(3 * x.size), transcendentals=0,
                bytes_accessed=int(x.size * itemsize + 8 * grid0 * C)),
        )(x)

        ch_sum = psum.reshape(grid0, C).sum(axis=0)
        ch_sq = psq.reshape(grid0, C).sum(axis=0)
        mean = ch_sum / count
        # TODO(synk): one-pass E[x^2]-mean^2 can lose precision when |mean|>>std.
        var = jnp.maximum(ch_sq / count - mean * mean, 0.0)
        inv_std = jax.lax.rsqrt(var + EPS)
        scale = gamma.reshape(C).astype(jnp.float32) * inv_std
        shift = beta.reshape(C).astype(jnp.float32) - mean * scale

        y = pl.pallas_call(
            _normalize2d_kernel,
            out_shape=jax.ShapeDtypeStruct(x.shape, x.dtype),
            grid_spec=pltpu.PrefetchScalarGridSpec(
                num_scalar_prefetch=0, grid=(grid0,),
                in_specs=[x_spec, vec_spec, vec_spec], out_specs=x_spec),
            compiler_params=pltpu.CompilerParams(
                dimension_semantics=("parallel",),
                vmem_limit_bytes=_vmem_limit(blk_bytes)),
            cost_estimate=pl.CostEstimate(
                flops=int(2 * x.size), transcendentals=0,
                bytes_accessed=int(2 * x.size * itemsize)),
        )(x, scale.reshape(1, C), shift.reshape(1, C))

    else:
        # ---- 4-D NCHW path: free reshape to (N/f, f*C, H*W), no transposes.
        N, C, H, W = x.shape
        HW = H * W
        count = float(N * HW)
        f = _choose_fold(N, C, itemsize)
        Np, Cp = N // f, f * C
        x3 = x.reshape(Np, Cp, HW)        # pure row-major reshape (free)

        auto_n, auto_hw = _auto_tiles(Np, Cp, HW, itemsize)
        n_tile = auto_n if n_tile is None else n_tile
        hw_tile = auto_hw if hw_tile is None else hw_tile
        assert Np % n_tile == 0 and HW % hw_tile == 0
        assert hw_tile == HW or hw_tile % 128 == 0
        grid = (Np // n_tile, HW // hw_tile)
        blk_bytes = n_tile * Cp * hw_tile * itemsize

        x_spec = pl.BlockSpec((n_tile, Cp, hw_tile), lambda i, j: (i, 0, j))
        part_spec = pl.BlockSpec((1, 1, Cp), lambda i, j: (i, 0, 0))
        chan_spec = pl.BlockSpec((Cp, 1), lambda i, j: (0, 0))

        # Pass 1: streaming per-N-block partial sums (N axis megacore-parallel).
        psum, psq = pl.pallas_call(
            _stats_kernel,
            out_shape=(jax.ShapeDtypeStruct((grid[0], 1, Cp), jnp.float32),) * 2,
            grid_spec=pltpu.PrefetchScalarGridSpec(
                num_scalar_prefetch=0, grid=grid,
                in_specs=[x_spec], out_specs=(part_spec, part_spec)),
            compiler_params=pltpu.CompilerParams(
                dimension_semantics=("parallel", "arbitrary"),
                vmem_limit_bytes=_vmem_limit(blk_bytes)),
            cost_estimate=pl.CostEstimate(
                flops=int(3 * x3.size), transcendentals=0,
                bytes_accessed=int(x3.size * itemsize + 8 * grid[0] * Cp)),
        )(x3)

        # Tiny (C,)-sized epilogue in plain JAX: unfold, finalize, fold affine.
        ch_sum = psum.reshape(grid[0] * f, C).sum(axis=0)
        ch_sq = psq.reshape(grid[0] * f, C).sum(axis=0)
        mean = ch_sum / count
        # TODO(synk): one-pass E[x^2]-mean^2 can lose precision when |mean|>>std.
        var = jnp.maximum(ch_sq / count - mean * mean, 0.0)
        inv_std = jax.lax.rsqrt(var + EPS)
        scale = gamma.reshape(C).astype(jnp.float32) * inv_std
        shift = beta.reshape(C).astype(jnp.float32) - mean * scale
        scale_f = jnp.tile(scale, f).reshape(Cp, 1)
        shift_f = jnp.tile(shift, f).reshape(Cp, 1)

        # Pass 2: streaming normalize, both grid axes parallel.
        y3 = pl.pallas_call(
            _normalize_kernel,
            out_shape=jax.ShapeDtypeStruct(x3.shape, x3.dtype),
            grid_spec=pltpu.PrefetchScalarGridSpec(
                num_scalar_prefetch=0, grid=grid,
                in_specs=[x_spec, chan_spec, chan_spec], out_specs=x_spec),
            compiler_params=pltpu.CompilerParams(
                dimension_semantics=("parallel", "parallel"),
                vmem_limit_bytes=_vmem_limit(blk_bytes)),
            cost_estimate=pl.CostEstimate(
                flops=int(2 * x3.size), transcendentals=0,
                bytes_accessed=int(2 * x3.size * itemsize)),
        )(x3, scale_f, shift_f)
        y = y3.reshape(x.shape)

    # Moving-statistic update (Day-33 convention: new = m*old + (1-m)*batch).
    C = mean.shape[0]
    new_mean = (MOMENTUM * moving_mean.reshape(C).astype(jnp.float32)
                + (1.0 - MOMENTUM) * mean)
    new_var = (MOMENTUM * moving_var.reshape(C).astype(jnp.float32)
               + (1.0 - MOMENTUM) * var)
    return (y,
            new_mean.reshape(moving_mean.shape).astype(moving_mean.dtype),
            new_var.reshape(moving_var.shape).astype(moving_var.dtype))


# --------------------------------------------------------------------------
# Self-test
# --------------------------------------------------------------------------
if __name__ == "__main__":
    key = jax.random.PRNGKey(0)

    def reference(x, gamma, beta, mm, mv):
        xf = x.astype(jnp.float32)
        axes = (0,) if x.ndim == 2 else (0, 2, 3)
        mean = xf.mean(axis=axes, keepdims=True)
        var = ((xf - mean) ** 2).mean(axis=axes, keepdims=True)
        y = gamma * (xf - mean) / jnp.sqrt(var + EPS) + beta
        new_mm = MOMENTUM * mm + (1.0 - MOMENTUM) * mean.reshape(mm.shape)
        new_mv = MOMENTUM * mv + (1.0 - MOMENTUM) * var.reshape(mv.shape)
        return y, new_mm, new_mv

    def check(x, gamma, beta, mm, mv, *, atol, n_tile=None, hw_tile=None):
        y, nm, nv = batch_norm_forward(x, gamma, beta, mm, mv,
                                       n_tile=n_tile, hw_tile=hw_tile)
        jax.block_until_ready((y, nm, nv))
        y_ref, nm_ref, nv_ref = reference(x, gamma, beta, mm, mv)
        assert jnp.allclose(y.astype(jnp.float32), y_ref, atol=atol, rtol=atol)
        assert jnp.allclose(nm, nm_ref, atol=1e-4, rtol=1e-4)
        assert jnp.allclose(nv, nv_ref, atol=1e-4, rtol=1e-4)

    k0, k1, k2, k3 = jax.random.split(key, 4)

    # 1) Main case: 4-D NCHW fp32 (BatchNorm(num_features=4, num_dims=4)).
    #    C=4 < 8 exercises the small-C sublane fold (f=2).
    N, C, H, W = 2, 4, 16, 16
    gamma = jnp.ones((1, C, 1, 1), jnp.float32)
    beta = jnp.zeros((1, C, 1, 1), jnp.float32)
    mm = jnp.zeros((1, C, 1, 1), jnp.float32)
    mv = jnp.zeros((1, C, 1, 1), jnp.float32)
    x = jax.random.normal(k0, (N, C, H, W), jnp.float32)
    check(x, gamma, beta, mm, mv, atol=1e-4)

    # 2) Forced multi-block grid (exercises per-block partial sums + the
    #    HW-axis accumulation path).
    N2, C2 = 4, 8
    gamma2 = 1.0 + 0.1 * jax.random.normal(k1, (1, C2, 1, 1), jnp.float32)
    beta2 = 0.1 * jax.random.normal(k2, (1, C2, 1, 1), jnp.float32)
    mm2 = jnp.zeros((1, C2, 1, 1), jnp.float32)
    mv2 = jnp.ones((1, C2, 1, 1), jnp.float32)
    x2 = jax.random.normal(k3, (N2, C2, H, W), jnp.float32)
    check(x2, gamma2, beta2, mm2, mv2, atol=1e-4, n_tile=2, hw_tile=128)

    # 3) 2-D (dense) case: BatchNorm(num_features=32, num_dims=2),
    #    lane-dense path with C on the lane axis.
    Nd, Cd = 8, 32
    xd = jax.random.normal(k1, (Nd, Cd), jnp.float32)
    check(xd, jnp.ones((1, Cd), jnp.float32), jnp.zeros((1, Cd), jnp.float32),
          jnp.zeros((1, Cd), jnp.float32), jnp.zeros((1, Cd), jnp.float32),
          atol=1e-4)

    # 4) bf16 I/O with fp32 accumulation (fold f=2 -> C'=8 for bf16).
    xb = jax.random.normal(k2, (N, C, H, W), jnp.float32).astype(jnp.bfloat16)
    check(xb, gamma, beta, mm, mv, atol=3e-2)

    print("KERNEL_OK")
</pallas_src>

<mosaic_0001>
module attributes {stable_mosaic.version = 11 : i64} {
  func.func @_stats_kernel(%arg0: i32, %arg1: i32, %arg2: memref<1x8x256xf32, #tpu.memory_space<vmem>>, %arg3: memref<1x1x8xf32, #tpu.memory_space<vmem>>, %arg4: memref<1x1x8xf32, #tpu.memory_space<vmem>>) attributes {dimension_semantics = [#tpu.dimension_semantics<parallel>, #tpu.dimension_semantics<arbitrary>], iteration_bounds = array<i64: 1, 1>, scalar_prefetch = 0 : i64, scratch_operands = 0 : i64, tpu.core_type = #tpu.core_type<tc>, window_params = [{transform_indices = @transform_0, window_bounds = array<i64: 1, 8, 256>}, {transform_indices = @transform_1, window_bounds = array<i64: 1, 1, 8>}, {transform_indices = @transform_2, window_bounds = array<i64: 1, 1, 8>}]} {
    %c0_i32 = arith.constant 0 : i32
    %0 = arith.cmpi eq, %arg1, %c0_i32 : i32
    %1 = arith.extui %0 : i1 to i32
    %c0_i32_0 = arith.constant 0 : i32
    %2 = arith.cmpi ne, %1, %c0_i32_0 : i32
    scf.if %2 {
      %cst_16 = arith.constant 0.000000e+00 : f32
      %15 = vector.broadcast %cst_16 : f32 to vector<1x1x8xf32>
      %c0_17 = arith.constant 0 : index
      %c0_18 = arith.constant 0 : index
      %c0_19 = arith.constant 0 : index
      %16 = vector.load %arg3[%c0_17, %c0_18, %c0_19] : memref<1x1x8xf32, #tpu.memory_space<vmem>>, vector<1x1x8xf32>
      tpu.vector_store %arg3[%c0_17, %c0_18, %c0_19], %15 {strides = array<i32>} : memref<1x1x8xf32, #tpu.memory_space<vmem>>, vector<1x1x8xf32>,
      %cst_20 = arith.constant 0.000000e+00 : f32
      %17 = vector.broadcast %cst_20 : f32 to vector<1x1x8xf32>
      %c0_21 = arith.constant 0 : index
      %c0_22 = arith.constant 0 : index
      %c0_23 = arith.constant 0 : index
      %18 = vector.load %arg4[%c0_21, %c0_22, %c0_23] : memref<1x1x8xf32, #tpu.memory_space<vmem>>, vector<1x1x8xf32>
      tpu.vector_store %arg4[%c0_21, %c0_22, %c0_23], %17 {strides = array<i32>} : memref<1x1x8xf32, #tpu.memory_space<vmem>>, vector<1x1x8xf32>,
    } else {
    }
    %c0 = arith.constant 0 : index
    %c0_1 = arith.constant 0 : index
    %c0_2 = arith.constant 0 : index
    %3 = vector.load %arg2[%c0, %c0_1, %c0_2] : memref<1x8x256xf32, #tpu.memory_space<vmem>>, vector<1x8x256xf32>
    %c0_3 = arith.constant 0 : index
    %c0_4 = arith.constant 0 : index
    %c0_5 = arith.constant 0 : index
    %4 = vector.load %arg3[%c0_3, %c0_4, %c0_5] : memref<1x1x8xf32, #tpu.memory_space<vmem>>, vector<1x1x8xf32>
    %cst = arith.constant dense<0.000000e+00> : vector<8xf32>
    %5 = vector.multi_reduction <add>, %3, %cst [0, 2] : vector<1x8x256xf32> to vector<8xf32>
    %6 = vector.shape_cast %5 : vector<8xf32> to vector<1x1x8xf32>
    %7 = arith.addf %4, %6 : vector<1x1x8xf32>
    %c0_6 = arith.constant 0 : index
    %c0_7 = arith.constant 0 : index
    %c0_8 = arith.constant 0 : index
    %8 = vector.load %arg3[%c0_6, %c0_7, %c0_8] : memref<1x1x8xf32, #tpu.memory_space<vmem>>, vector<1x1x8xf32>
    tpu.vector_store %arg3[%c0_6, %c0_7, %c0_8], %7 {strides = array<i32>} : memref<1x1x8xf32, #tpu.memory_space<vmem>>, vector<1x1x8xf32>,
    %c0_9 = arith.constant 0 : index
    %c0_10 = arith.constant 0 : index
    %c0_11 = arith.constant 0 : index
    %9 = vector.load %arg4[%c0_9, %c0_10, %c0_11] : memref<1x1x8xf32, #tpu.memory_space<vmem>>, vector<1x1x8xf32>
    %10 = arith.mulf %3, %3 : vector<1x8x256xf32>
    %cst_12 = arith.constant dense<0.000000e+00> : vector<8xf32>
    %11 = vector.multi_reduction <add>, %10, %cst_12 [0, 2] : vector<1x8x256xf32> to vector<8xf32>
    %12 = vector.shape_cast %11 : vector<8xf32> to vector<1x1x8xf32>
    %13 = arith.addf %9, %12 : vector<1x1x8xf32>
    %c0_13 = arith.constant 0 : index
    %c0_14 = arith.constant 0 : index
    %c0_15 = arith.constant 0 : index
    %14 = vector.load %arg4[%c0_13, %c0_14, %c0_15] : memref<1x1x8xf32, #tpu.memory_space<vmem>>, vector<1x1x8xf32>
    tpu.vector_store %arg4[%c0_13, %c0_14, %c0_15], %13 {strides = array<i32>} : memref<1x1x8xf32, #tpu.memory_space<vmem>>, vector<1x1x8xf32>,
    return
  }
  func.func @transform_0(%arg0: i32, %arg1: i32) -> (i32, i32, i32) {
    %c0_i32 = arith.constant 0 : i32
    %c0_i32_0 = arith.constant 0 : i32
    return %arg0, %c0_i32, %arg1 : i32, i32, i32
  }
  func.func @transform_1(%arg0: i32, %arg1: i32) -> (i32, i32, i32) {
    %c0_i32 = arith.constant 0 : i32
    %c0_i32_0 = arith.constant 0 : i32
    %c0_i32_1 = arith.constant 0 : i32
    return %arg0, %c0_i32, %c0_i32_0 : i32, i32, i32
  }
  func.func @transform_2(%arg0: i32, %arg1: i32) -> (i32, i32, i32) {
    %c0_i32 = arith.constant 0 : i32
    %c0_i32_0 = arith.constant 0 : i32
    %c0_i32_1 = arith.constant 0 : i32
    return %arg0, %c0_i32, %c0_i32_0 : i32, i32, i32
  }
}

</mosaic_0001>

<llo_original>
// kernel: tpu_custom_call.1
$region0: #{tpu_custom_call.1}
  #allocation0 [shape = 'u32[]', space=smem, size = 0x4, offset = 0x4, fixed_abs, tag = 'smem constant byte address 0x4 - core index']
  #allocation1 [shape = 'u32[144,128]{1,0:T(1,128)}', space=vmem, size = 0x12000, scoped, tag = 'internal scratch']
  %s0 = inlined_call_operand.hbm [shape: f32[1,8,256], index: 0, kind: input, shape index: {}]
  %s1 = inlined_call_operand.hbm [shape: f32[1,1,8], index: 1, kind: output, shape index: {0}]
  %s2 = inlined_call_operand.hbm [shape: f32[1,1,8], index: 2, kind: output, shape index: {1}]
  %3 = xla_tuple %s1, %s2
  %s4 = sld [smem:[#allocation0]]
  $region30: #{tpu_custom_call.1} parent=0
    _
  %s6 = ssub.s32 1, %s4
  %s7 = scalar_select 0, %s6, %s4
  $region1: #{tpu_custom_call.1} parent=0
    #allocation2 [shape = 'u8[8192]{0}', space=vmem, size = 0x2000, scoped, tag = 'input window, operand 0, single buffered']
    #allocation3 [shape = 's32[1]{0}', space=sflag, size = 0x4, scoped, tag = 'scoped memory for tpu_custom_call.1']
    #allocation4 [shape = 's32[1]{0}', space=sflag, size = 0x4, scoped, tag = 'scoped memory for tpu_custom_call.1']
    #allocation5 [shape = 'u8[512]{0}', space=vmem, size = 0x400, scoped, tag = 'output window, operand 0, single buffered']
    #allocation6 [shape = 'u8[512]{0}', space=vmem, size = 0x400, scoped, tag = 'output window, operand 1, single buffered']
    #allocation7 [shape = 's32[1]{0}', space=sflag, size = 0x4, scoped, tag = 'scoped memory for tpu_custom_call.1']
    %8 = vsyncpa [#allocation3], 0
    %9 = vsyncpa [#allocation4], 0
    %10 = vsyncpa [#allocation7], 0
    // Predicated region
    $region2: #{tpu_custom_call.1} parent=1 // pred_check
      _
    $region3: #{tpu_custom_call.1} parent=1 // pred_check_branch
      %12 = sbr.rel (0) target = $region5
    $region4: #{tpu_custom_call.1} parent=1 // pred_region
      %s14 = ssub.s32 256, 256
      %15 = vsyncadd [#allocation3], %s14
      %s17 = sshll.u32 [#allocation2], 4
      %s18 = int_to_ptr.vmem [resolvable:$true] %s17
      %20 = dma.hbm_to_vmem [thread:$0]  %s0, 256, %s18, [#allocation3]
    $region5: #{tpu_custom_call.1} parent=1 // pred_fallthru
      _
    // Predicated region
    $region6: #{tpu_custom_call.1} parent=1 // pred_check
      _
    $region7: #{tpu_custom_call.1} parent=1 // pred_check_branch
      %22 = sbr.rel (0) target = $region9
    $region8: #{tpu_custom_call.1} parent=1 // pred_region
      %23 = dma.done [#allocation3], 256
    $region9: #{tpu_custom_call.1} parent=1 // pred_fallthru
      _
    %p24 = scmp.eq.s32.totalorder 0, 0
    // Predicated region
    $region10: #{tpu_custom_call.1} parent=1 // pred_check
      %p25 = pneg %p24
    $region11: #{tpu_custom_call.1} parent=1 // pred_check_branch
      %27 = sbr.rel (%p25) target = $region13
    $region12: #{tpu_custom_call.1} parent=1 // pred_region
      %vm28 = vcmask 57344
      %29 = vst.msk [vmem:[#allocation5] sm:$0x1] %vm28, 0.0
      %30 = vst.msk [vmem:[#allocation6] sm:$0x1] %vm28, 0.0
    $region13: #{tpu_custom_call.1} parent=1 // pred_fallthru
      _
    %v31 = vld [vmem:[#allocation2] sm:$0xff]
    %v32 = vld [vmem:[#allocation2 + $0x8] sm:$0xff]
    %v33 = vld [vmem:[#allocation5] sm:$0x1]
    %v34 = vadd.f32 %v31, %v32
    %35 = vadd.xlane.f32.xlu0 %v34
    %v36 = vpop.xlane.xlu0 %35
    %v38 = vlaneseq
    %v39 = vshrl.u32 %v38, 7
    %v40 = vsub.s32 0, %v39
    %v41 = vrot.slane %v36, %v40
    %v42 = vlaneseq
    %v43 = vshrl.u32 %v42, 7
    %v44 = vsub.s32 1, %v43
    %v45 = vrot.slane %v36, %v44
    %v46 = vlaneseq
    %v47 = vshrl.u32 %v46, 7
    %v48 = vsub.s32 2, %v47
    %v49 = vrot.slane %v36, %v48
    %v50 = vlaneseq
    %v51 = vshrl.u32 %v50, 7
    %v52 = vsub.s32 3, %v51
    %v53 = vrot.slane %v36, %v52
    %v54 = vlaneseq
    %v55 = vshrl.u32 %v54, 7
    %v56 = vsub.s32 4, %v55
    %v57 = vrot.slane %v36, %v56
    %v58 = vlaneseq
    %v59 = vshrl.u32 %v58, 7
    %v60 = vsub.s32 5, %v59
    %v61 = vrot.slane %v36, %v60
    %v62 = vlaneseq
    %v63 = vshrl.u32 %v62, 7
    %v64 = vsub.s32 6, %v63
    %v65 = vrot.slane %v36, %v64
    %v66 = vlaneseq
    %v67 = vshrl.u32 %v66, 7
    %v68 = vsub.s32 7, %v67
    %v69 = vrot.slane %v36, %v68
    %v70 = vcombine.low %v41, %v45
    %v71 = vcombine.low %v49, %v53
    %v72 = vcombine.low %v57, %v61
    %v73 = vcombine.low %v65, %v69
    %v75 = vunpack.c.l.s4 1966171168
    %v76 = vunpack.c.0.s8 %v75
    %v77 = vlaneseq
    %v78 = vshrl.u32 %v77, 7
    %v79 = vsub.s32 %v76, %v78
    %v80 = vrot.slane %v70, %v79
    %v82 = vunpack.c.l.s4 1966171168
    %v83 = vunpack.c.0.s8 %v82
    %v84 = vlaneseq
    %v85 = vshrl.u32 %v84, 7
    %v86 = vsub.s32 %v83, %v85
    %v87 = vrot.slane %v71, %v86
    %v89 = vunpack.c.l.s4 1966171168
    %v90 = vunpack.c.0.s8 %v89
    %v91 = vlaneseq
    %v92 = vshrl.u32 %v91, 7
    %v93 = vsub.s32 %v90, %v92
    %v94 = vrot.slane %v72, %v93
    %v96 = vunpack.c.l.s4 1966171168
    %v97 = vunpack.c.0.s8 %v96
    %v98 = vlaneseq
    %v99 = vshrl.u32 %v98, 7
    %v100 = vsub.s32 %v97, %v99
    %v101 = vrot.slane %v73, %v100
    %v102 = vcombine.low %v80, %v87
    %v103 = vcombine.low %v94, %v101
    %v105 = vunpack.c.l.s4 1966171168
    %v106 = vunpack.c.0.s8 %v105
    %v107 = vlaneseq
    %v108 = vshrl.u32 %v107, 7
    %v109 = vsub.s32 %v106, %v108
    %v110 = vrot.slane %v102, %v109
    %v112 = vunpack.c.l.s4 1966171168
    %v113 = vunpack.c.0.s8 %v112
    %v114 = vlaneseq
    %v115 = vshrl.u32 %v114, 7
    %v116 = vsub.s32 %v113, %v115
    %v117 = vrot.slane %v103, %v116
    %v118 = vcombine.low %v110, %v117
    %119 = vset.pattern.permute.xlu0 0
    %120 = vperm.xlu0 %119, %v118
    %v121 = vpop.permute.xlu0 %120
    %v122 = vlaneseq
    %v123 = vand.u32 %v122, 127
    %v124 = vlaneseq
    %v125 = vshrl.u32 %v124, 7
    %v126 = vsub.s32 %v123, %v125
    %v127 = vrot.slane %v121, %v126
    %v129 = vunpack.c.l.s4 1966171168
    %v130 = vunpack.c.0.s8 %v129
    %v131 = vlaneseq
    %v132 = vshrl.u32 %v131, 7
    %v133 = vsub.s32 %v130, %v132
    %v134 = vrot.slane %v127, %v133
    %v136 = vunpack.c.l.s4 1966171168
    %v137 = vunpack.c.0.s8 %v136
    %v138 = vlaneseq
    %v139 = vshrl.u32 %v138, 7
    %v140 = vsub.s32 %v137, %v139
    %v141 = vrot.slane %v134, %v140
    %v143 = vadd.f32 %v33, %v141
    %vm144 = vcmask 57344
    %145 = vst.msk [vmem:[#allocation5] sm:$0x1] %vm144, %v143
    %v146 = vld [vmem:[#allocation6] sm:$0x1]
    %v147 = vmul.f32 %v31, %v31
    %v148 = vmul.f32 %v32, %v32
    %v149 = vadd.f32 %v147, %v148
    %150 = vadd.xlane.f32.xlu0 %v149
    %v151 = vpop.xlane.xlu0 %150
    %v153 = vlaneseq
    %v154 = vshrl.u32 %v153, 7
    %v155 = vsub.s32 0, %v154
    %v156 = vrot.slane %v151, %v155
    %v157 = vlaneseq
    %v158 = vshrl.u32 %v157, 7
    %v159 = vsub.s32 1, %v158
    %v160 = vrot.slane %v151, %v159
    %v161 = vlaneseq
    %v162 = vshrl.u32 %v161, 7
    %v163 = vsub.s32 2, %v162
    %v164 = vrot.slane %v151, %v163
    %v165 = vlaneseq
    %v166 = vshrl.u32 %v165, 7
    %v167 = vsub.s32 3, %v166
    %v168 = vrot.slane %v151, %v167
    %v169 = vlaneseq
    %v170 = vshrl.u32 %v169, 7
    %v171 = vsub.s32 4, %v170
    %v172 = vrot.slane %v151, %v171
    %v173 = vlaneseq
    %v174 = vshrl.u32 %v173, 7
    %v175 = vsub.s32 5, %v174
    %v176 = vrot.slane %v151, %v175
    %v177 = vlaneseq
    %v178 = vshrl.u32 %v177, 7
    %v179 = vsub.s32 6, %v178
    %v180 = vrot.slane %v151, %v179
    %v181 = vlaneseq
    %v182 = vshrl.u32 %v181, 7
    %v183 = vsub.s32 7, %v182
    %v184 = vrot.slane %v151, %v183
    %v185 = vcombine.low %v156, %v160
    %v186 = vcombine.low %v164, %v168
    %v187 = vcombine.low %v172, %v176
    %v188 = vcombine.low %v180, %v184
    %v190 = vunpack.c.l.s4 1966171168
    %v191 = vunpack.c.0.s8 %v190
    %v192 = vlaneseq
    %v193 = vshrl.u32 %v192, 7
    %v194 = vsub.s32 %v191, %v193
    %v195 = vrot.slane %v185, %v194
    %v197 = vunpack.c.l.s4 1966171168
    %v198 = vunpack.c.0.s8 %v197
    %v199 = vlaneseq
    %v200 = vshrl.u32 %v199, 7
    %v201 = vsub.s32 %v198, %v200
    %v202 = vrot.slane %v186, %v201
    %v204 = vunpack.c.l.s4 1966171168
    %v205 = vunpack.c.0.s8 %v204
    %v206 = vlaneseq
    %v207 = vshrl.u32 %v206, 7
    %v208 = vsub.s32 %v205, %v207
    %v209 = vrot.slane %v187, %v208
    %v211 = vunpack.c.l.s4 1966171168
    %v212 = vunpack.c.0.s8 %v211
    %v213 = vlaneseq
    %v214 = vshrl.u32 %v213, 7
    %v215 = vsub.s32 %v212, %v214
    %v216 = vrot.slane %v188, %v215
    %v217 = vcombine.low %v195, %v202
    %v218 = vcombine.low %v209, %v216
    %v220 = vunpack.c.l.s4 1966171168
    %v221 = vunpack.c.0.s8 %v220
    %v222 = vlaneseq
    %v223 = vshrl.u32 %v222, 7
    %v224 = vsub.s32 %v221, %v223
    %v225 = vrot.slane %v217, %v224
    %v227 = vunpack.c.l.s4 1966171168
    %v228 = vunpack.c.0.s8 %v227
    %v229 = vlaneseq
    %v230 = vshrl.u32 %v229, 7
    %v231 = vsub.s32 %v228, %v230
    %v232 = vrot.slane %v218, %v231
    %v233 = vcombine.low %v225, %v232
    %234 = vset.pattern.permute.xlu0 0
    %235 = vperm.xlu0 %234, %v233
    %v236 = vpop.permute.xlu0 %235
    %v237 = vlaneseq
    %v238 = vshrl.u32 %v237, 7
    %v239 = vsub.s32 %v123, %v238
    %v240 = vrot.slane %v236, %v239
    %v242 = vunpack.c.l.s4 1966171168
    %v243 = vunpack.c.0.s8 %v242
    %v244 = vlaneseq
    %v245 = vshrl.u32 %v244, 7
    %v246 = vsub.s32 %v243, %v245
    %v247 = vrot.slane %v240, %v246
    %v249 = vunpack.c.l.s4 1966171168
    %v250 = vunpack.c.0.s8 %v249
    %v251 = vlaneseq
    %v252 = vshrl.u32 %v251, 7
    %v253 = vsub.s32 %v250, %v252
    %v254 = vrot.slane %v247, %v253
    %v256 = vadd.f32 %v146, %v254
    %257 = vst.msk [vmem:[#allocation6] sm:$0x1] %vm144, %v256
    // Predicated region
    $region14: #{tpu_custom_call.1} parent=1 // pred_check
      _
    $region15: #{tpu_custom_call.1} parent=1 // pred_check_branch
      %259 = sbr.rel (0) target = $region17
    $region16: #{tpu_custom_call.1} parent=1 // pred_region
      %s261 = ssub.s32 16, 16
      %262 = vsyncadd [#allocation4], %s261
      %s264 = sshll.u32 [#allocation5], 4
      %s265 = int_to_ptr.vmem [resolvable:$true] %s264
      %267 = dma.vmem_to_hbm [thread:$0]  %s265, 16, %s1, [#allocation4]
    $region17: #{tpu_custom_call.1} parent=1 // pred_fallthru
      _
    // Predicated region
    $region18: #{tpu_custom_call.1} parent=1 // pred_check
      _
    $region19: #{tpu_custom_call.1} parent=1 // pred_check_branch
      %269 = sbr.rel (0) target = $region21
    $region20: #{tpu_custom_call.1} parent=1 // pred_region
      %s271 = ssub.s32 16, 16
      %272 = vsyncadd [#allocation7], %s271
      %s274 = sshll.u32 [#allocation6], 4
      %s275 = int_to_ptr.vmem [resolvable:$true] %s274
      %277 = dma.vmem_to_hbm [thread:$0]  %s275, 16, %s2, [#allocation7]
    $region21: #{tpu_custom_call.1} parent=1 // pred_fallthru
      _
    // Predicated region
    $region22: #{tpu_custom_call.1} parent=1 // pred_check
      _
    $region23: #{tpu_custom_call.1} parent=1 // pred_check_branch
      %279 = sbr.rel (0) target = $region25
    $region24: #{tpu_custom_call.1} parent=1 // pred_region
      %280 = dma.done [#allocation4], 16
    $region25: #{tpu_custom_call.1} parent=1 // pred_fallthru
      _
    // Predicated region
    $region26: #{tpu_custom_call.1} parent=1 // pred_check
      _
    $region27: #{tpu_custom_call.1} parent=1 // pred_check_branch
      %282 = sbr.rel (0) target = $region29
    $region28: #{tpu_custom_call.1} parent=1 // pred_region
      %283 = dma.done [#allocation7], 16
    $region29: #{tpu_custom_call.1} parent=1 // pred_fallthru
      _
    %284 = vsyncpa [#allocation3], 1
    %285 = vsyncpa [#allocation4], 1
    %286 = vsyncpa [#allocation7], 1

</llo_original>
